<compile_context>
chip_gen: v7x
topology: tpu7x:2x2x1
jax: 0.10.0
libtpu: 0.0.40
codegen_flags: <defaults>
</compile_context>

<pallas_src>
import jax
import jax.numpy as jnp
from jax import lax
from jax.experimental import pallas as pl
from jax.experimental.pallas import tpu as pltpu

# ---- model hyperparameters implied by the module (small demo sizes) ----
INPUT_DIM = 32
HIDDEN_DIM = 64
LATENT_SIZE = 16          # VAE_model.latent_size
POST_LATENT_SIZE = 32     # post_latent_layer_size (add_post_latent_layers=True, 1 layer)

BATCH = 512               # demo batch
B_TILE = 256              # samples per grid step -> 2 steps (matches v7x's 2 TCs)

# ---- packed-parameter slab layout (feature-major / transposed weights) ----
# rows 0:64   lanes 0:32  -> W1^T   [HID, IN]    lane 32 -> b1    [HID, 1]
# rows 64:96  lanes 0:64  -> W_eff  [POST, HID]  lane 64 -> b_eff [POST, 1]
#                                                 lane 65 -> wc    [POST, 1]
# row 0, lane 127 -> bc (scalar)
R_W1 = 0
R_WE = HIDDEN_DIM                       # 64
SLAB_ROWS = R_WE + POST_LATENT_SIZE     # 96  (multiple of 8)
SLAB_LANES = 128

# "NT" matmul: contract lhs dim 1 with rhs dim 1 (rhs stored [N, K]).
NT_DIMS = (((1,), (1,)), ((), ()))


def finetune_cox_kernel(x_ref, slab_ref, out_ref):
    # x_ref: [B_TILE, INPUT_DIM]  (streamed straight from HBM, no host copy)
    x = x_ref[...]

    w1 = slab_ref[R_W1:R_W1 + HIDDEN_DIM, 0:INPUT_DIM]              # [HID, IN]
    b1 = slab_ref[R_W1:R_W1 + HIDDEN_DIM, INPUT_DIM:INPUT_DIM + 1]  # [HID, 1]
    we = slab_ref[R_WE:R_WE + POST_LATENT_SIZE, 0:HIDDEN_DIM]       # [POST, HID]
    be = slab_ref[R_WE:R_WE + POST_LATENT_SIZE,
                  HIDDEN_DIM:HIDDEN_DIM + 1]                         # [POST, 1]
    wc = slab_ref[R_WE:R_WE + POST_LATENT_SIZE,
                  HIDDEN_DIM + 1:HIDDEN_DIM + 2]                     # [POST, 1]
    bc = slab_ref[0:1, SLAB_LANES - 1:SLAB_LANES]                    # [1, 1]

    # encoder layer 1: h = relu(W1 @ x^T + b1)       -> [HID, B_TILE]
    # (NT dot_general: contract on x's feature dim, batch lands on lanes.)
    h = lax.dot_general(w1, x, NT_DIMS, preferred_element_type=jnp.float32)
    h = jnp.maximum(h + b1, 0.0)
    # fused (encoder-mu ∘ post-latent) layer: relu(W_eff @ h + b_eff)
    p = jnp.maximum(
        jnp.dot(we, h, preferred_element_type=jnp.float32) + be, 0.0)
    # cox head: VPU multiply + sublane reduce (avoids a degenerate N=1 MXU dot)
    out_ref[...] = jnp.sum(p * wc, axis=0, keepdims=True) + bc       # [1, B_TILE]


def pack_params(params):
    """Pack all weights/biases into one lane-dense f32 slab (feature-major).

    The encoder's 2nd Linear (mu columns only — logvar columns are never used
    by the forward pass) is folded into the post-latent Linear here, since
    there is no nonlinearity between them.
    """
    (w1, b1, w2, b2, wp, bp, wc, bc) = params   # weights stored [in, out]
    w2mu = w2[:, :LATENT_SIZE]                  # [HID, LAT]   (mu | logvar ordering)
    b2mu = b2[:, :LATENT_SIZE]                  # [1, LAT]
    w_eff = wp.T @ w2mu.T                       # [POST, HID]
    b_eff = (b2mu @ wp + bp).T                  # [POST, 1]

    slab = jnp.zeros((SLAB_ROWS, SLAB_LANES), jnp.float32)
    slab = slab.at[R_W1:R_W1 + HIDDEN_DIM, 0:INPUT_DIM].set(w1.T)
    slab = slab.at[R_W1:R_W1 + HIDDEN_DIM,
                   INPUT_DIM:INPUT_DIM + 1].set(b1.reshape(HIDDEN_DIM, 1))
    slab = slab.at[R_WE:R_WE + POST_LATENT_SIZE, 0:HIDDEN_DIM].set(w_eff)
    slab = slab.at[R_WE:R_WE + POST_LATENT_SIZE,
                   HIDDEN_DIM:HIDDEN_DIM + 1].set(b_eff)
    slab = slab.at[R_WE:R_WE + POST_LATENT_SIZE,
                   HIDDEN_DIM + 1:HIDDEN_DIM + 2].set(wc)
    slab = slab.at[0:1, SLAB_LANES - 1:SLAB_LANES].set(bc)
    return slab


def finetune_cox_forward(x, slab, *, b_tile=B_TILE):
    """x: [B, INPUT_DIM] f32, slab: packed params. Returns [B, 1] cox scores."""
    B = x.shape[0]
    b_pad = ((B + b_tile - 1) // b_tile) * b_tile
    if b_pad != B:
        # Padded rows compute relu(bias) garbage but are sliced off below.
        x = jnp.pad(x, ((0, b_pad - B), (0, 0)))

    out = pl.pallas_call(
        finetune_cox_kernel,
        out_shape=jax.ShapeDtypeStruct((1, b_pad), jnp.float32),
        grid=(b_pad // b_tile,),
        in_specs=[
            pl.BlockSpec((b_tile, INPUT_DIM), lambda i: (i, 0)),      # x stream
            pl.BlockSpec((SLAB_ROWS, SLAB_LANES), lambda i: (0, 0)),  # resident params
        ],
        out_specs=pl.BlockSpec((1, b_tile), lambda i: (0, i)),
        compiler_params=pltpu.CompilerParams(
            dimension_semantics=("parallel",)),   # v7x: 2 TCs split the batch
    )(x, slab)
    return out[0, :B][:, None]


def init_params(key):
    ks = jax.random.split(key, 8)
    scale = 0.1
    w1 = scale * jax.random.normal(ks[0], (INPUT_DIM, HIDDEN_DIM), jnp.float32)
    b1 = scale * jax.random.normal(ks[1], (1, HIDDEN_DIM), jnp.float32)
    w2 = scale * jax.random.normal(ks[2], (HIDDEN_DIM, 2 * LATENT_SIZE), jnp.float32)
    b2 = scale * jax.random.normal(ks[3], (1, 2 * LATENT_SIZE), jnp.float32)
    wp = scale * jax.random.normal(ks[4], (LATENT_SIZE, POST_LATENT_SIZE), jnp.float32)
    bp = scale * jax.random.normal(ks[5], (1, POST_LATENT_SIZE), jnp.float32)
    wc = scale * jax.random.normal(ks[6], (POST_LATENT_SIZE, 1), jnp.float32)
    bc = scale * jax.random.normal(ks[7], (1, 1), jnp.float32)
    return (w1, b1, w2, b2, wp, bp, wc, bc)


def reference_forward(x, params):
    """Unfused pure-JAX reference matching the PyTorch module (eval mode)."""
    (w1, b1, w2, b2, wp, bp, wc, bc) = params
    h = jnp.maximum(x @ w1 + b1, 0.0)            # encoder Linear + ReLU
    enc = h @ w2 + b2                            # encoder Linear (mu | logvar)
    mu = enc[:, :LATENT_SIZE]
    p = jnp.maximum(mu @ wp + bp, 0.0)           # post-latent Linear + ReLU (+Dropout=id)
    return p @ wc + bc                           # cox head


if __name__ == "__main__":
    key = jax.random.PRNGKey(0)
    k_x, k_p = jax.random.split(key)
    x = jax.random.normal(k_x, (BATCH, INPUT_DIM), jnp.float32)
    params = init_params(k_p)
    slab = pack_params(params)

    out = finetune_cox_forward(x, slab)
    out = jax.block_until_ready(out)

    ref = reference_forward(x, params)
    assert out.shape == (BATCH, 1)
    assert jnp.allclose(out, ref, atol=2e-4, rtol=1e-4), "mismatch vs JAX reference"
    print("KERNEL_OK")
</pallas_src>

<mosaic_0001>
module attributes {stable_mosaic.version = 11 : i64} {
  func.func @finetune_cox_kernel(%arg0: i32, %arg1: memref<256x32xf32, #tpu.memory_space<vmem>>, %arg2: memref<96x128xf32, #tpu.memory_space<vmem>>, %arg3: memref<1x256xf32, #tpu.memory_space<vmem>>) attributes {dimension_semantics = [#tpu.dimension_semantics<parallel>], iteration_bounds = array<i64: 2>, scalar_prefetch = 0 : i64, scratch_operands = 0 : i64, tpu.core_type = #tpu.core_type<tc>, window_params = [{transform_indices = @transform_0, window_bounds = array<i64: 256, 32>}, {pipeline_mode = #tpu.pipeline_mode<synchronous>, transform_indices = @transform_1, window_bounds = array<i64: 96, 128>}, {transform_indices = @transform_2, window_bounds = array<i64: 1, 256>}]} {
    %c0 = arith.constant 0 : index
    %c0_0 = arith.constant 0 : index
    %0 = vector.load %arg1[%c0, %c0_0] : memref<256x32xf32, #tpu.memory_space<vmem>>, vector<256x32xf32>
    %c0_1 = arith.constant 0 : index
    %c0_2 = arith.constant 0 : index
    %1 = vector.load %arg2[%c0_1, %c0_2] : memref<96x128xf32, #tpu.memory_space<vmem>>, vector<64x32xf32>
    %c0_3 = arith.constant 0 : index
    %c32 = arith.constant 32 : index
    %2 = vector.load %arg2[%c0_3, %c32] : memref<96x128xf32, #tpu.memory_space<vmem>>, vector<64x1xf32>
    %c64 = arith.constant 64 : index
    %c0_4 = arith.constant 0 : index
    %3 = vector.load %arg2[%c64, %c0_4] : memref<96x128xf32, #tpu.memory_space<vmem>>, vector<32x64xf32>
    %c64_5 = arith.constant 64 : index
    %c64_6 = arith.constant 64 : index
    %4 = vector.load %arg2[%c64_5, %c64_6] : memref<96x128xf32, #tpu.memory_space<vmem>>, vector<32x1xf32>
    %c64_7 = arith.constant 64 : index
    %c65 = arith.constant 65 : index
    %5 = vector.load %arg2[%c64_7, %c65] : memref<96x128xf32, #tpu.memory_space<vmem>>, vector<32x1xf32>
    %c0_8 = arith.constant 0 : index
    %c127 = arith.constant 127 : index
    %6 = vector.load %arg2[%c0_8, %c127] : memref<96x128xf32, #tpu.memory_space<vmem>>, vector<1x1xf32>
    %cst = arith.constant dense<0.000000e+00> : vector<64x256xf32>
    %7 = tpu.matmul %1, %0, %cst {dimension_numbers = #tpu.dot_dimension_numbers<[1], [1], [0], [0], [0, 0, 1, 0], [], []>} : vector<64x32xf32>, vector<256x32xf32>, vector<64x256xf32> -> vector<64x256xf32>
    %8 = vector.broadcast %2 : vector<64x1xf32> to vector<64x256xf32>
    %9 = arith.addf %7, %8 : vector<64x256xf32>
    %cst_9 = arith.constant 0.000000e+00 : f32
    %10 = vector.broadcast %cst_9 : f32 to vector<64x256xf32>
    %11 = arith.maximumf %9, %10 : vector<64x256xf32>
    %cst_10 = arith.constant dense<0.000000e+00> : vector<32x256xf32>
    %12 = tpu.matmul %3, %11, %cst_10 {dimension_numbers = #tpu.dot_dimension_numbers<[1], [0], [0], [1], [0, 0, 1, 1], [], []>} : vector<32x64xf32>, vector<64x256xf32>, vector<32x256xf32> -> vector<32x256xf32>
    %13 = vector.broadcast %4 : vector<32x1xf32> to vector<32x256xf32>
    %14 = arith.addf %12, %13 : vector<32x256xf32>
    %cst_11 = arith.constant 0.000000e+00 : f32
    %15 = vector.broadcast %cst_11 : f32 to vector<32x256xf32>
    %16 = arith.maximumf %14, %15 : vector<32x256xf32>
    %17 = vector.broadcast %5 : vector<32x1xf32> to vector<32x256xf32>
    %18 = arith.mulf %16, %17 : vector<32x256xf32>
    %cst_12 = arith.constant dense<0.000000e+00> : vector<256xf32>
    %19 = vector.multi_reduction <add>, %18, %cst_12 [0] : vector<32x256xf32> to vector<256xf32>
    %20 = vector.shape_cast %19 : vector<256xf32> to vector<1x256xf32>
    %21 = vector.broadcast %6 : vector<1x1xf32> to vector<1x256xf32>
    %22 = arith.addf %20, %21 : vector<1x256xf32>
    %c0_13 = arith.constant 0 : index
    %c0_14 = arith.constant 0 : index
    %23 = vector.load %arg3[%c0_13, %c0_14] : memref<1x256xf32, #tpu.memory_space<vmem>>, vector<1x256xf32>
    tpu.vector_store %arg3[%c0_13, %c0_14], %22 {strides = array<i32>} : memref<1x256xf32, #tpu.memory_space<vmem>>, vector<1x256xf32>,
    return
  }
  func.func @transform_0(%arg0: i32) -> (i32, i32) {
    %c0_i32 = arith.constant 0 : i32
    %c0_i32_0 = arith.constant 0 : i32
    return %arg0, %c0_i32 : i32, i32
  }
  func.func @transform_1(%arg0: i32) -> (i32, i32) {
    %c0_i32 = arith.constant 0 : i32
    %c0_i32_0 = arith.constant 0 : i32
    %c0_i32_1 = arith.constant 0 : i32
    return %c0_i32, %c0_i32_0 : i32, i32
  }
  func.func @transform_2(%arg0: i32) -> (i32, i32) {
    %c0_i32 = arith.constant 0 : i32
    %c0_i32_0 = arith.constant 0 : i32
    return %c0_i32, %arg0 : i32, i32
  }
}

</mosaic_0001>

<llo_original>
// kernel: tpu_custom_call.1
$region0: #{tpu_custom_call.1}
  #allocation0 [shape = 'u32[]', space=smem, size = 0x4, offset = 0x4, fixed_abs, tag = 'smem constant byte address 0x4 - core index']
  #allocation1 [shape = 'u32[144,128]{1,0:T(1,128)}', space=vmem, size = 0x12000, scoped, tag = 'internal scratch']
  %s0 = inlined_call_operand.vmem [shape: f32[512,32], index: 0, kind: input, shape index: {}]
  %s1 = inlined_call_operand.vmem [shape: f32[96,128], index: 1, kind: input, shape index: {}]
  %s2 = inlined_call_operand.hbm [shape: f32[1,512], index: 2, kind: output, shape index: {}]
  %s3 = sld [smem:[#allocation0]]
  $region41: #{tpu_custom_call.1} parent=0
    _
  %s5 = ssub.s32 1, %s3
  %s6 = scalar_select 0, %s5, %s3
  $region1: #{tpu_custom_call.1} parent=0
    #allocation2 [shape = 'u8[2048]{0}', space=vmem, size = 0x800, scoped, tag = 'output window, operand 0']
    #allocation3 [shape = 's32[2]{0}', space=sflag, size = 0x8, scoped, tag = 'scoped memory for tpu_custom_call.1']
    %7 = vsyncpa [#allocation3], 0
    %s8 = scalar_lea.sflag [#allocation3], 1
    %9 = vsyncpa %s8, 0
    loop: start=0, step=1, limit=4
    $region2: #{tpu_custom_call.1} parent=1 // loop_pre_header
      _
    $region3: #{tpu_custom_call.1} parent=1 // loop_header
      %s11 = sphi 0, %s15
      %p12 = scmp.ge.s32.totalorder %s11, 4
      %s21 = sphi 0, %s23
      %s24 = sphi 0, %s21
      %s25 = sphi 0, %s24
      %s41 = sphi 0, %s25
      %s45 = sphi 0, %s45
      %s47 = sphi 0, %s45
      %s48 = sphi 0, %s47
      %s62 = sphi 0, %s48
      %s68 = sphi 0, %s70
      %s71 = sphi 0, %s68
      %s72 = sphi 0, %s71
      %s88 = sphi 0, %s72
    $region4: #{tpu_custom_call.1} parent=1 // loop_header_branch
      %14 = sbr.rel (%p12) target = $region8
    $region5: #{tpu_custom_call.1} parent=1 // loop_body
      %s16 = ssub.s32 %s11, 1
      %s17 = ssub.s32 %s11, 2
      %s18 = sadd.s32 %s11, 1
      %s19 = ssub.s32 %s11, %s18
      %p20 = scmp.eq.s32.totalorder %s19, 0
      %s22 = sadd.s32 %s21, 1
      %s23 = scalar_select %p20, %s21, %s22
      %p26 = pneg %p20
      %p27 = scmp.eq.s32.totalorder %s11, 1
      %p28 = por %p26, %p27
      %p29 = scmp.ne.s32.totalorder %s21, %s24
      %p30 = scmp.eq.s32.totalorder %s11, 0
      %p31 = por %p29, %p30
      %p32 = scmp.ne.s32.totalorder %s21, %s24
      %p33 = scmp.eq.s32.totalorder %s16, 1
      %p34 = por %p32, %p33
      %p35 = scmp.ne.s32.totalorder %s24, %s25
      %p36 = scmp.eq.s32.totalorder %s16, 0
      %p37 = por %p35, %p36
      %p38 = scmp.ne.s32.totalorder %s24, %s25
      %p39 = scmp.eq.s32.totalorder %s17, 1
      %p40 = por %p38, %p39
      %p42 = scmp.ne.s32.totalorder %s25, %s41
      %p43 = scmp.eq.s32.totalorder %s17, 0
      %p44 = por %p42, %p43
      %s46 = sadd.s32 %s45, 1
      %p49 = scmp.eq.s32.totalorder %s11, 1
      %p50 = scmp.ne.s32.totalorder %s45, %s47
      %p51 = scmp.eq.s32.totalorder %s11, 0
      %p52 = por %p50, %p51
      %p53 = scmp.ne.s32.totalorder %s45, %s47
      %p54 = scmp.eq.s32.totalorder %s16, 1
      %p55 = por %p53, %p54
      %p56 = scmp.ne.s32.totalorder %s47, %s48
      %p57 = scmp.eq.s32.totalorder %s16, 0
      %p58 = por %p56, %p57
      %p59 = scmp.ne.s32.totalorder %s47, %s48
      %p60 = scmp.eq.s32.totalorder %s17, 1
      %p61 = por %p59, %p60
      %p63 = scmp.ne.s32.totalorder %s48, %s62
      %p64 = scmp.eq.s32.totalorder %s17, 0
      %p65 = por %p63, %p64
      %s66 = ssub.s32 %s11, %s18
      %p67 = scmp.eq.s32.totalorder %s66, 0
      %s69 = sadd.s32 %s68, 1
      %s70 = scalar_select %p67, %s68, %s69
      %p73 = pneg %p67
      %p74 = scmp.eq.s32.totalorder %s11, 1
      %p75 = por %p73, %p74
      %p76 = scmp.ne.s32.totalorder %s68, %s71
      %p77 = scmp.eq.s32.totalorder %s11, 0
      %p78 = por %p76, %p77
      %p79 = scmp.ne.s32.totalorder %s68, %s71
      %p80 = scmp.eq.s32.totalorder %s16, 1
      %p81 = por %p79, %p80
      %p82 = scmp.ne.s32.totalorder %s71, %s72
      %p83 = scmp.eq.s32.totalorder %s16, 0
      %p84 = por %p82, %p83
      %p85 = scmp.ne.s32.totalorder %s71, %s72
      %p86 = scmp.eq.s32.totalorder %s17, 1
      %p87 = por %p85, %p86
      %p89 = scmp.ne.s32.totalorder %s72, %s88
      %p90 = scmp.eq.s32.totalorder %s17, 0
      %p91 = por %p89, %p90
      %p92 = scmp.le.s32.totalorder 1, %s11
      %p93 = scmp.lt.s32.totalorder %s11, 3
      %p94 = pnand %p92, %p93
      %p95 = pneg %p94
      // Predicated region
      $region9: #{tpu_custom_call.1} parent=5 // pred_check
        _
      $region10: #{tpu_custom_call.1} parent=5 // pred_check_branch
        %97 = sbr.rel (%p94) target = $region12
      $region11: #{tpu_custom_call.1} parent=5 // pred_region
        %s98 = ssub.s32 %s11, 1
        // Predicated region
        $region13: #{tpu_custom_call.1} parent=11 // pred_check
          %p99 = pneg %p58
        $region14: #{tpu_custom_call.1} parent=11 // pred_check_branch
          %101 = sbr.rel (%p99) target = $region16
        $region15: #{tpu_custom_call.1} parent=11 // pred_region
          _
        $region16: #{tpu_custom_call.1} parent=11 // pred_fallthru
          _
      $region12: #{tpu_custom_call.1} parent=5 // pred_fallthru
        _
      %p102 = scmp.lt.s32.totalorder %s11, 2
      // Predicated region
      $region17: #{tpu_custom_call.1} parent=5 // pred_check
        %p103 = pneg %p102
      $region18: #{tpu_custom_call.1} parent=5 // pred_check_branch
        %105 = sbr.rel (%p103) target = $region20
      $region19: #{tpu_custom_call.1} parent=5 // pred_region
        // Predicated region
        $region21: #{tpu_custom_call.1} parent=19 // pred_check
          %p106 = pneg %p31
        $region22: #{tpu_custom_call.1} parent=19 // pred_check_branch
          %108 = sbr.rel (%p106) target = $region24
        $region23: #{tpu_custom_call.1} parent=19 // pred_region
          %s109 = smul.u32 32, %s11
          %p110 = scmp.lt.s32.totalorder %s109, 63
          %s111 = scalar_select %p110, %s109, 63
          %s112 = smul.addr %s111, 8
          %s113 = scalar_lea.vmem %s0, %s112
          %s114 = smul.u32 32, %s11
        $region24: #{tpu_custom_call.1} parent=19 // pred_fallthru
          _
      $region20: #{tpu_custom_call.1} parent=5 // pred_fallthru
        _
      %p115 = scmp.le.s32.totalorder 1, %s11
      %p116 = scmp.lt.s32.totalorder %s11, 3
      %p117 = pnand %p115, %p116
      %p118 = pneg %p117
      // Predicated region
      $region25: #{tpu_custom_call.1} parent=5 // pred_check
        _
      $region26: #{tpu_custom_call.1} parent=5 // pred_check_branch
        %120 = sbr.rel (%p117) target = $region28
      $region27: #{tpu_custom_call.1} parent=5 // pred_region
        %s121 = ssub.s32 %s11, 1
        %s122 = smul.u32 32, %s16
        %p123 = scmp.lt.s32.totalorder %s122, 63
        %s124 = scalar_select %p123, %s122, 63
        %s125 = smul.addr %s124, 8
        %s126 = scalar_lea.vmem %s0, %s125
        %p127 = pneg %p37
        %p128 = pneg %p34
        %p129 = pneg %p58
        %p130 = pneg %p55
        %p131 = pneg %p84
        %p132 = pneg %p81
        %s133 = sand.u32 %s71, 1
        %s134 = scalar_lea.sflag [#allocation3], %s133
        %s135 = sand.u32 %s71, 1
        %s136 = smul.addr %s135, 2
        %s137 = scalar_lea.vmem [#allocation2], %s136
        %s138 = smul.u32 32, %s16
        %p139 = scmp.lt.s32.totalorder %s138, 63
        %s140 = scalar_select %p139, %s138, 63
        %s141 = smul.addr %s140, 8
        %s142 = scalar_lea.vmem %s0, %s141
        %s143 = smul.u32 32, %s16
        %s144 = smul.u32 2, %s16
        %v145 = vld [vmem:[%s142] sm:$0xff]
        %v146 = vld [vmem:[%s142 + $0x8] sm:$0xff]
        %v147 = vld [vmem:[%s142 + $0x10] sm:$0xff]
        %v148 = vld [vmem:[%s142 + $0x18] sm:$0xff]
        %v149 = vld [vmem:[%s142 + $0x20] sm:$0xff]
        %v150 = vld [vmem:[%s142 + $0x28] sm:$0xff]
        %v151 = vld [vmem:[%s142 + $0x30] sm:$0xff]
        %v152 = vld [vmem:[%s142 + $0x38] sm:$0xff]
        %v153 = vld [vmem:[%s142 + $0x40] sm:$0xff]
        %v154 = vld [vmem:[%s142 + $0x48] sm:$0xff]
        %v155 = vld [vmem:[%s142 + $0x50] sm:$0xff]
        %v156 = vld [vmem:[%s142 + $0x58] sm:$0xff]
        %v157 = vld [vmem:[%s142 + $0x60] sm:$0xff]
        %v158 = vld [vmem:[%s142 + $0x68] sm:$0xff]
        %v159 = vld [vmem:[%s142 + $0x70] sm:$0xff]
        %v160 = vld [vmem:[%s142 + $0x78] sm:$0xff]
        %v161 = vld [vmem:[%s142 + $0x80] sm:$0xff]
        %v162 = vld [vmem:[%s142 + $0x88] sm:$0xff]
        %v163 = vld [vmem:[%s142 + $0x90] sm:$0xff]
        %v164 = vld [vmem:[%s142 + $0x98] sm:$0xff]
        %v165 = vld [vmem:[%s142 + $0xa0] sm:$0xff]
        %v166 = vld [vmem:[%s142 + $0xa8] sm:$0xff]
        %v167 = vld [vmem:[%s142 + $0xb0] sm:$0xff]
        %v168 = vld [vmem:[%s142 + $0xb8] sm:$0xff]
        %v169 = vld [vmem:[%s142 + $0xc0] sm:$0xff]
        %v170 = vld [vmem:[%s142 + $0xc8] sm:$0xff]
        %v171 = vld [vmem:[%s142 + $0xd0] sm:$0xff]
        %v172 = vld [vmem:[%s142 + $0xd8] sm:$0xff]
        %v173 = vld [vmem:[%s142 + $0xe0] sm:$0xff]
        %v174 = vld [vmem:[%s142 + $0xe8] sm:$0xff]
        %v175 = vld [vmem:[%s142 + $0xf0] sm:$0xff]
        %v176 = vld [vmem:[%s142 + $0xf8] sm:$0xff]
        %v177 = vld [vmem:[%s1] sm:$0xff]
        %v178 = vld [vmem:[%s1 + $0x8] sm:$0xff]
        %v179 = vld [vmem:[%s1 + $0x10] sm:$0xff]
        %v180 = vld [vmem:[%s1 + $0x18] sm:$0xff]
        %v181 = vld [vmem:[%s1 + $0x20] sm:$0xff]
        %v182 = vld [vmem:[%s1 + $0x28] sm:$0xff]
        %v183 = vld [vmem:[%s1 + $0x30] sm:$0xff]
        %v184 = vld [vmem:[%s1 + $0x38] sm:$0xff]
        %v185 = vld [vmem:[%s1 + $0x40] sm:$0xff]
        %v186 = vld [vmem:[%s1 + $0x48] sm:$0xff]
        %v187 = vld [vmem:[%s1 + $0x50] sm:$0xff]
        %v188 = vld [vmem:[%s1 + $0x58] sm:$0xff]
        %v189 = vld [vmem:[%s1] sm:$0x1]
        %191 = vset.pattern.permute.xlu0 32
        %192 = vperm.xlu0 %191, %v177
        %v193 = vpop.permute.xlu0 %192
        %196 = vset.pattern.permute.xlu0 32
        %197 = vperm.xlu0 %196, %v178
        %v198 = vpop.permute.xlu0 %197
        %201 = vset.pattern.permute.xlu0 32
        %202 = vperm.xlu0 %201, %v179
        %v203 = vpop.permute.xlu0 %202
        %206 = vset.pattern.permute.xlu0 32
        %207 = vperm.xlu0 %206, %v180
        %v208 = vpop.permute.xlu0 %207
        %211 = vset.pattern.permute.xlu0 32
        %212 = vperm.xlu0 %211, %v181
        %v213 = vpop.permute.xlu0 %212
        %216 = vset.pattern.permute.xlu0 32
        %217 = vperm.xlu0 %216, %v182
        %v218 = vpop.permute.xlu0 %217
        %221 = vset.pattern.permute.xlu0 32
        %222 = vperm.xlu0 %221, %v183
        %v223 = vpop.permute.xlu0 %222
        %226 = vset.pattern.permute.xlu0 32
        %227 = vperm.xlu0 %226, %v184
        %v228 = vpop.permute.xlu0 %227
        %vm230 = vcmask 261120
        %v231 = vsel %vm230, %v177, 0
        %v233 = vsel %vm230, %v178, 0
        %v235 = vsel %vm230, %v179, 0
        %v237 = vsel %vm230, %v180, 0
        %v239 = vsel %vm230, %v181, 0
        %v241 = vsel %vm230, %v182, 0
        %v243 = vsel %vm230, %v183, 0
        %v245 = vsel %vm230, %v184, 0
        %v248 = vsel %vm230, %v145, 0
        %v251 = vsel %vm230, %v146, 0
        %v254 = vsel %vm230, %v147, 0
        %v257 = vsel %vm230, %v148, 0
        %v260 = vsel %vm230, %v149, 0
        %v263 = vsel %vm230, %v150, 0
        %v266 = vsel %vm230, %v151, 0
        %v269 = vsel %vm230, %v152, 0
        %v272 = vsel %vm230, %v153, 0
        %v275 = vsel %vm230, %v154, 0
        %v278 = vsel %vm230, %v155, 0
        %v281 = vsel %vm230, %v156, 0
        %v284 = vsel %vm230, %v157, 0
        %v287 = vsel %vm230, %v158, 0
        %v290 = vsel %vm230, %v159, 0
        %v293 = vsel %vm230, %v160, 0
        %v296 = vsel %vm230, %v161, 0
        %v299 = vsel %vm230, %v162, 0
        %v302 = vsel %vm230, %v163, 0
        %v305 = vsel %vm230, %v164, 0
        %v308 = vsel %vm230, %v165, 0
        %v311 = vsel %vm230, %v166, 0
        %v314 = vsel %vm230, %v167, 0
        %v317 = vsel %vm230, %v168, 0
        %v320 = vsel %vm230, %v169, 0
        %v323 = vsel %vm230, %v170, 0
        %v326 = vsel %vm230, %v171, 0
        %v329 = vsel %vm230, %v172, 0
        %v332 = vsel %vm230, %v173, 0
        %v335 = vsel %vm230, %v174, 0
        %v338 = vsel %vm230, %v175, 0
        %v341 = vsel %vm230, %v176, 0
        %343 = vmatprep.subr.mxu0 0.0
        %344 = vmatpush1.xpose.msra.mxu0 %v248
        %345 = vmatprep.subr.mxu0 0.0
        %346 = vmatpush1.xpose.msra.mxu0 %v251
        %347 = vmatprep.subr.mxu0 0.0
        %348 = vmatpush1.xpose.msra.mxu0 %v254
        %349 = vmatprep.subr.mxu0 0.0
        %350 = vmatpush1.xpose.msra.mxu0 %v257
        %351 = vmatprep.subr.mxu0 0.0
        %352 = vmatpush1.xpose.msra.mxu0 %v260
        %353 = vmatprep.subr.mxu0 0.0
        %354 = vmatpush1.xpose.msra.mxu0 %v263
        %355 = vmatprep.subr.mxu0 0.0
        %356 = vmatpush1.xpose.msra.mxu0 %v266
        %357 = vmatprep.subr.mxu0 0.0
        %358 = vmatpush1.xpose.msra.mxu0 %v269
        %359 = vmatprep.subr.mxu0 0.0
        %360 = vmatpush1.xpose.msra.mxu0 %v272
        %361 = vmatprep.subr.mxu0 0.0
        %362 = vmatpush1.xpose.msra.mxu0 %v275
        %363 = vmatprep.subr.mxu0 0.0
        %364 = vmatpush1.xpose.msra.mxu0 %v278
        %365 = vmatprep.subr.mxu0 0.0
        %366 = vmatpush1.xpose.msra.mxu0 %v281
        %367 = vmatprep.subr.mxu0 0.0
        %368 = vmatpush1.xpose.msra.mxu0 %v284
        %369 = vmatprep.subr.mxu0 0.0
        %370 = vmatpush1.xpose.msra.mxu0 %v287
        %371 = vmatprep.subr.mxu0 0.0
        %372 = vmatpush1.xpose.msra.mxu0 %v290
        %373 = vmatprep.subr.mxu0 0.0
        %374 = vmatpush1.xpose.msra.mxu0 %v293
        %375 = vmatprep.subr.mxu0 0.0
        %376 = vmatpush1.xpose.msra.mxu0 %v296
        %377 = vmatprep.subr.mxu0 0.0
        %378 = vmatpush1.xpose.msra.mxu0 %v299
        %379 = vmatprep.subr.mxu0 0.0
        %380 = vmatpush1.xpose.msra.mxu0 %v302
        %381 = vmatprep.subr.mxu0 0.0
        %382 = vmatpush1.xpose.msra.mxu0 %v305
        %383 = vmatprep.subr.mxu0 0.0
        %384 = vmatpush1.xpose.msra.mxu0 %v308
        %385 = vmatprep.subr.mxu0 0.0
        %386 = vmatpush1.xpose.msra.mxu0 %v311
        %387 = vmatprep.subr.mxu0 0.0
        %388 = vmatpush1.xpose.msra.mxu0 %v314
        %389 = vmatprep.subr.mxu0 0.0
        %390 = vmatpush1.xpose.msra.mxu0 %v317
        %391 = vmatprep.subr.mxu0 0.0
        %392 = vmatpush1.xpose.msra.mxu0 %v320
        %393 = vmatprep.subr.mxu0 0.0
        %394 = vmatpush1.xpose.msra.mxu0 %v323
        %395 = vmatprep.subr.mxu0 0.0
        %396 = vmatpush1.xpose.msra.mxu0 %v326
        %397 = vmatprep.subr.mxu0 0.0
        %398 = vmatpush1.xpose.msra.mxu0 %v329
        %399 = vmatprep.subr.mxu0 0.0
        %400 = vmatpush1.xpose.msra.mxu0 %v332
        %401 = vmatprep.subr.mxu0 0.0
        %402 = vmatpush1.xpose.msra.mxu0 %v335
        %403 = vmatprep.subr.mxu0 0.0
        %404 = vmatpush1.xpose.msra.mxu0 %v338
        %405 = vmatprep.subr.mxu0 0.0
        %406 = vmatpush1.xpose.msra.mxu0 %v341
        %407 = vmatprep.mubr.f32.mxu0 0.0
        %408 = vmatmul.mubr.f32.gmra.mrb[0].mxu0 %v231
        %v409 = vpop.f32.mrb[0].mxu0
        %v410 = vadd.f32 %v193, %v409
        %v411 = vpop.f32.mrb[0].mxu0
        %v412 = vadd.f32 %v193, %v411
        %413 = vmatprep.mubr.f32.mxu0 0.0
        %414 = vmatmul.mubr.f32.gmra.mrb[0].mxu0 %v233
        %v415 = vpop.f32.mrb[0].mxu0
        %v416 = vadd.f32 %v198, %v415
        %v417 = vpop.f32.mrb[0].mxu0
        %v418 = vadd.f32 %v198, %v417
        %419 = vmatprep.mubr.f32.mxu0 0.0
        %420 = vmatmul.mubr.f32.gmra.mrb[0].mxu0 %v235
        %v421 = vpop.f32.mrb[0].mxu0
        %v422 = vadd.f32 %v203, %v421
        %v423 = vpop.f32.mrb[0].mxu0
        %v424 = vadd.f32 %v203, %v423
        %425 = vmatprep.mubr.f32.mxu0 0.0
        %426 = vmatmul.mubr.f32.gmra.mrb[0].mxu0 %v237
        %v427 = vpop.f32.mrb[0].mxu0
        %v428 = vadd.f32 %v208, %v427
        %v429 = vpop.f32.mrb[0].mxu0
        %v430 = vadd.f32 %v208, %v429
        %431 = vmatprep.mubr.f32.mxu0 0.0
        %432 = vmatmul.mubr.f32.gmra.mrb[0].mxu0 %v239
        %v433 = vpop.f32.mrb[0].mxu0
        %v434 = vadd.f32 %v213, %v433
        %v435 = vpop.f32.mrb[0].mxu0
        %v436 = vadd.f32 %v213, %v435
        %437 = vmatprep.mubr.f32.mxu0 0.0
        %438 = vmatmul.mubr.f32.gmra.mrb[0].mxu0 %v241
        %v439 = vpop.f32.mrb[0].mxu0
        %v440 = vadd.f32 %v218, %v439
        %v441 = vpop.f32.mrb[0].mxu0
        %v442 = vadd.f32 %v218, %v441
        %443 = vmatprep.mubr.f32.mxu0 0.0
        %444 = vmatmul.mubr.f32.gmra.mrb[0].mxu0 %v243
        %v445 = vpop.f32.mrb[0].mxu0
        %v446 = vadd.f32 %v223, %v445
        %v447 = vpop.f32.mrb[0].mxu0
        %v448 = vadd.f32 %v223, %v447
        %449 = vmatprep.mubr.f32.mxu0 0.0
        %450 = vmatmul.mubr.f32.gmra.mrb[0].mxu0 %v245
        %v451 = vpop.f32.mrb[0].mxu0
        %v452 = vadd.f32 %v228, %v451
        %v453 = vpop.f32.mrb[0].mxu0
        %v454 = vadd.f32 %v228, %v453
        %455 = vdwg.mxu0
        %v456 = vmax.f32 %v410, 0.0
        %v457 = vmax.f32 %v412, 0.0
        %v458 = vmax.f32 %v416, 0.0
        %v459 = vmax.f32 %v418, 0.0
        %v460 = vmax.f32 %v422, 0.0
        %v461 = vmax.f32 %v424, 0.0
        %v462 = vmax.f32 %v428, 0.0
        %v463 = vmax.f32 %v430, 0.0
        %v464 = vmax.f32 %v434, 0.0
        %v465 = vmax.f32 %v436, 0.0
        %v466 = vmax.f32 %v440, 0.0
        %v467 = vmax.f32 %v442, 0.0
        %v468 = vmax.f32 %v446, 0.0
        %v469 = vmax.f32 %v448, 0.0
        %v470 = vmax.f32 %v452, 0.0
        %v471 = vmax.f32 %v454, 0.0
        %473 = vset.pattern.permute.xlu0 64
        %474 = vperm.xlu0 %473, %v185
        %v475 = vpop.permute.xlu0 %474
        %478 = vset.pattern.permute.xlu0 64
        %479 = vperm.xlu0 %478, %v186
        %v480 = vpop.permute.xlu0 %479
        %483 = vset.pattern.permute.xlu0 64
        %484 = vperm.xlu0 %483, %v187
        %v485 = vpop.permute.xlu0 %484
        %488 = vset.pattern.permute.xlu0 64
        %489 = vperm.xlu0 %488, %v188
        %v490 = vpop.permute.xlu0 %489
        %vm492 = vcmask 523264
        %v493 = vsel %vm492, %v185, 0
        %v495 = vsel %vm492, %v186, 0
        %v497 = vsel %vm492, %v187, 0
        %v499 = vsel %vm492, %v188, 0
        %501 = vmatprep.subr.mxu0 %v457
        %502 = vmatpush1.msra.mxu0 %v456
        %503 = vmatprep.subr.mxu0 %v459
        %504 = vmatpush1.msra.mxu0 %v458
        %505 = vmatprep.subr.mxu0 %v461
        %506 = vmatpush1.msra.mxu0 %v460
        %507 = vmatprep.subr.mxu0 %v463
        %508 = vmatpush1.msra.mxu0 %v462
        %509 = vmatprep.subr.mxu0 %v465
        %510 = vmatpush1.msra.mxu0 %v464
        %511 = vmatprep.subr.mxu0 %v467
        %512 = vmatpush1.msra.mxu0 %v466
        %513 = vmatprep.subr.mxu0 %v469
        %514 = vmatpush1.msra.mxu0 %v468
        %515 = vmatprep.subr.mxu0 %v471
        %516 = vmatpush1.msra.mxu0 %v470
        %517 = vmatprep.subr.mxu0 0.0
        %518 = vmatpush1.msra.mxu0 0.0
        %519 = vmatprep.subr.mxu0 0.0
        %520 = vmatpush1.msra.mxu0 0.0
        %521 = vmatprep.subr.mxu0 0.0
        %522 = vmatpush1.msra.mxu0 0.0
        %523 = vmatprep.subr.mxu0 0.0
        %524 = vmatpush1.msra.mxu0 0.0
        %525 = vmatprep.subr.mxu0 0.0
        %526 = vmatpush1.msra.mxu0 0.0
        %527 = vmatprep.subr.mxu0 0.0
        %528 = vmatpush1.msra.mxu0 0.0
        %529 = vmatprep.subr.mxu0 0.0
        %530 = vmatpush1.msra.mxu0 0.0
        %531 = vmatprep.subr.mxu0 0.0
        %532 = vmatpush1.msra.mxu0 0.0
        %533 = vmatprep.subr.mxu0 0.0
        %534 = vmatpush1.msra.mxu0 0.0
        %535 = vmatprep.subr.mxu0 0.0
        %536 = vmatpush1.msra.mxu0 0.0
        %537 = vmatprep.subr.mxu0 0.0
        %538 = vmatpush1.msra.mxu0 0.0
        %539 = vmatprep.subr.mxu0 0.0
        %540 = vmatpush1.msra.mxu0 0.0
        %541 = vmatprep.subr.mxu0 0.0
        %542 = vmatpush1.msra.mxu0 0.0
        %543 = vmatprep.subr.mxu0 0.0
        %544 = vmatpush1.msra.mxu0 0.0
        %545 = vmatprep.subr.mxu0 0.0
        %546 = vmatpush1.msra.mxu0 0.0
        %547 = vmatprep.subr.mxu0 0.0
        %548 = vmatpush1.msra.mxu0 0.0
        %549 = vmatprep.subr.mxu0 0.0
        %550 = vmatpush1.msra.mxu0 0.0
        %551 = vmatprep.subr.mxu0 0.0
        %552 = vmatpush1.msra.mxu0 0.0
        %553 = vmatprep.subr.mxu0 0.0
        %554 = vmatpush1.msra.mxu0 0.0
        %555 = vmatprep.subr.mxu0 0.0
        %556 = vmatpush1.msra.mxu0 0.0
        %557 = vmatprep.subr.mxu0 0.0
        %558 = vmatpush1.msra.mxu0 0.0
        %559 = vmatprep.subr.mxu0 0.0
        %560 = vmatpush1.msra.mxu0 0.0
        %561 = vmatprep.subr.mxu0 0.0
        %562 = vmatpush1.msra.mxu0 0.0
        %563 = vmatprep.subr.mxu0 0.0
        %564 = vmatpush1.msra.mxu0 0.0
        %565 = vmatprep.mubr.f32.mxu0 0.0
        %566 = vmatmul.mubr.f32.gmra.mrb[0].mxu0 %v493
        %v567 = vpop.f32.mrb[0].mxu0
        %v568 = vadd.f32 %v475, %v567
        %v569 = vpop.f32.mrb[0].mxu0
        %v570 = vadd.f32 %v475, %v569
        %571 = vmatprep.mubr.f32.mxu0 0.0
        %572 = vmatmul.mubr.f32.gmra.mrb[0].mxu0 %v495
        %v573 = vpop.f32.mrb[0].mxu0
        %v574 = vadd.f32 %v480, %v573
        %v575 = vpop.f32.mrb[0].mxu0
        %v576 = vadd.f32 %v480, %v575
        %577 = vmatprep.mubr.f32.mxu0 0.0
        %578 = vmatmul.mubr.f32.gmra.mrb[0].mxu0 %v497
        %v579 = vpop.f32.mrb[0].mxu0
        %v580 = vadd.f32 %v485, %v579
        %v581 = vpop.f32.mrb[0].mxu0
        %v582 = vadd.f32 %v485, %v581
        %583 = vmatprep.mubr.f32.mxu0 0.0
        %584 = vmatmul.mubr.f32.gmra.mrb[0].mxu0 %v499
        %v585 = vpop.f32.mrb[0].mxu0
        %v586 = vadd.f32 %v490, %v585
        %v587 = vpop.f32.mrb[0].mxu0
        %v588 = vadd.f32 %v490, %v587
        %589 = vdwg.mxu0
        %v590 = vmax.f32 %v568, 0.0
        %v591 = vmax.f32 %v570, 0.0
        %v592 = vmax.f32 %v574, 0.0
        %v593 = vmax.f32 %v576, 0.0
        %v594 = vmax.f32 %v580, 0.0
        %v595 = vmax.f32 %v582, 0.0
        %v596 = vmax.f32 %v586, 0.0
        %v597 = vmax.f32 %v588, 0.0
        %598 = vset.pattern.permute.xlu0 65
        %599 = vperm.xlu0 %598, %v185
        %v600 = vpop.permute.xlu0 %599
        %602 = vset.pattern.permute.xlu0 65
        %603 = vperm.xlu0 %602, %v186
        %v604 = vpop.permute.xlu0 %603
        %606 = vset.pattern.permute.xlu0 65
        %607 = vperm.xlu0 %606, %v187
        %v608 = vpop.permute.xlu0 %607
        %610 = vset.pattern.permute.xlu0 65
        %611 = vperm.xlu0 %610, %v188
        %v612 = vpop.permute.xlu0 %611
        %v614 = vmul.f32 %v590, %v600
        %v615 = vmul.f32 %v591, %v600
        %v616 = vmul.f32 %v592, %v604
        %v617 = vmul.f32 %v593, %v604
        %v618 = vmul.f32 %v594, %v608
        %v619 = vmul.f32 %v595, %v608
        %v620 = vmul.f32 %v596, %v612
        %v621 = vmul.f32 %v597, %v612
        %v622 = vadd.f32 %v614, %v616
        %v623 = vadd.f32 %v622, %v618
        %v624 = vadd.f32 %v623, %v620
        %v625 = vrot.slane %v624, 4
        %v626 = vadd.f32 %v624, %v625
        %v627 = vrot.slane %v626, 2
        %v628 = vadd.f32 %v626, %v627
        %v629 = vrot.slane %v628, 1
        %v630 = vadd.f32 %v628, %v629
        %v631 = vadd.f32 %v615, %v617
        %v632 = vadd.f32 %v631, %v619
        %v633 = vadd.f32 %v632, %v621
        %v634 = vrot.slane %v633, 4
        %v635 = vadd.f32 %v633, %v634
        %v636 = vrot.slane %v635, 2
        %v637 = vadd.f32 %v635, %v636
        %v638 = vrot.slane %v637, 1
        %v639 = vadd.f32 %v637, %v638
        %641 = vset.pattern.permute.xlu0 127
        %642 = vperm.xlu0 %641, %v189
        %v643 = vpop.permute.xlu0 %642
        %v645 = vadd.f32 %v630, %v643
        %v646 = vadd.f32 %v639, %v643
        %v649 = vcombine.low %v645, %v646
        %v651 = vunpack.c.l.s4 1966171168
        %v652 = vunpack.c.0.s8 %v651
        %v653 = vlaneseq
        %v654 = vshrl.u32 %v653, 7
        %v655 = vsub.s32 %v652, %v654
        %v656 = vrot.slane %v649, %v655
        %v658 = vunpack.c.l.s4 1966171168
        %v659 = vunpack.c.0.s8 %v658
        %v660 = vlaneseq
        %v661 = vshrl.u32 %v660, 7
        %v662 = vsub.s32 %v659, %v661
        %v663 = vrot.slane %v656, %v662
        %v665 = vlaneseq
        %vm666 = vcmp.ge.s32.totalorder %v665, 0
        %vm667 = vcmp.lt.s32.totalorder %v665, 256
        %vm668 = vmand %vm666, %vm667
        %669 = vst.msk [vmem:[%s137] sm:$0x3] %vm668, %v663
        %s670 = sand.u32 %s71, 1
        %s671 = scalar_lea.sflag [#allocation3], %s670
        %s672 = sand.u32 %s71, 1
        %s673 = smul.addr %s672, 2
        %s674 = scalar_lea.vmem [#allocation2], %s673
        // Predicated region
        $region29: #{tpu_custom_call.1} parent=27 // pred_check
          %p675 = pneg %p81
        $region30: #{tpu_custom_call.1} parent=27 // pred_check_branch
          %677 = sbr.rel (%p675) target = $region32
        $region31: #{tpu_custom_call.1} parent=27 // pred_region
          %s678 = smul.u32 2, %s16
          %s680 = ssub.s32 32, 32
          %681 = vsyncadd %s671, %s680
          %s682 = smul.addr %s678, 16
          %s683 = scalar_lea.hbm %s2, %s682
          %s685 = sshll.u32 %s674, 4
          %s686 = int_to_ptr.vmem [resolvable:$true] %s685
          %688 = dma.vmem_to_hbm [thread:$0]  %s686, 32, %s683, %s671
        $region32: #{tpu_custom_call.1} parent=27 // pred_fallthru
          _
      $region28: #{tpu_custom_call.1} parent=5 // pred_fallthru
        _
      %p689 = scmp.le.s32.totalorder 2, %s11
      // Predicated region
      $region33: #{tpu_custom_call.1} parent=5 // pred_check
        %p690 = pneg %p689
      $region34: #{tpu_custom_call.1} parent=5 // pred_check_branch
        %692 = sbr.rel (%p690) target = $region36
      $region35: #{tpu_custom_call.1} parent=5 // pred_region
        %s693 = ssub.s32 %s11, 2
        // Predicated region
        $region37: #{tpu_custom_call.1} parent=35 // pred_check
          %p694 = pneg %p87
        $region38: #{tpu_custom_call.1} parent=35 // pred_check_branch
          %696 = sbr.rel (%p694) target = $region40
        $region39: #{tpu_custom_call.1} parent=35 // pred_region
          %s697 = sand.u32 %s72, 1
          %s698 = scalar_lea.sflag [#allocation3], %s697
          %s699 = sand.u32 %s72, 1
          %s700 = smul.addr %s699, 2
          %s701 = scalar_lea.vmem [#allocation2], %s700
          %702 = dma.done %s698, 32
        $region40: #{tpu_custom_call.1} parent=35 // pred_fallthru
          _
      $region36: #{tpu_custom_call.1} parent=5 // pred_fallthru
        _
    $region6: #{tpu_custom_call.1} parent=1 // loop_footer
      %s15 = sadd.s32 1, %s11
    $region7: #{tpu_custom_call.1} parent=1 // loop_footer_branch
      %10 = sbr.rel target = $region3
    $region8: #{tpu_custom_call.1} parent=1 // loop_exit
      _
    %703 = vsyncpa [#allocation3], 1
    %s704 = scalar_lea.sflag [#allocation3], 1
    %705 = vsyncpa %s704, 1

</llo_original>
